<compile_context>
chip_gen: v7x
topology: tpu7x:2x2x1
jax: 0.10.0
libtpu: 0.0.40
codegen_flags: <defaults>
</compile_context>

<pallas_src>
import functools

import jax
import jax.numpy as jnp
from jax.experimental import pallas as pl
from jax.experimental.pallas import tpu as pltpu

HIDDEN = 64  # Args.hidden_size


# ----------------------------------------------------------------------------
# Kernel
# ----------------------------------------------------------------------------
# w1 planes : 0=e1  1=d1  2=f1_z  3=f1_a  4=i1_z  5=i1_zn  6=i2   (out dim = H)
# b1 rows   : 0=e_b1 1=d_b1 2=f_b1 3=i_b1 4=i_b2
# w2 planes : 0=e2  1=f2  2=d2  3=i3                                (in dim = H)
# b2 rows   : 0=e_b2 1=f_b2 2=d_b2 3=i_b3
def upn_kernel(enc_in_ref, action_ref, w1_ref, b1_ref, w2_ref, b2_ref,
               lat_ref, act_ref, dec_ref):
    B = action_ref.shape[0]
    S = enc_in_ref.shape[1]
    A = action_ref.shape[1]
    L = lat_ref.shape[1]
    H = w1_ref.shape[2]

    def mm(x, w):
        return jnp.dot(x, w, preferred_element_type=jnp.float32)

    def w1k(k, fan_in):
        return w1_ref[k][:fan_in, :]

    def b1k(k):
        return b1_ref[k:k + 1, :]

    def w2k(k, fan_out):
        return w2_ref[k][:, :fan_out]

    def b2k(k, fan_out):
        return b2_ref[k:k + 1, :fan_out]

    relu = lambda v: jnp.maximum(v, 0.0)

    x = enc_in_ref[...]        # [2B, S] = [state ; next_state]
    action = action_ref[...]   # [B, A]

    # ---- encoder, applied once to the stacked batch -------------------------
    eh = relu(mm(x, w1k(0, S)) + b1k(0))            # [2B, H]
    z_all = mm(eh, w2k(0, L)) + b2k(0, L)           # [2B, L]
    z, z_next = z_all[:B], z_all[B:]

    # ---- dynamics: split-K (no lane concat of [z, action]) ------------------
    fh = relu(mm(z, w1k(2, L)) + mm(action, w1k(3, A)) + b1k(2))    # [B, H]
    z_pred = mm(fh, w2k(1, L)) + b2k(1, L)                          # [B, L]

    # ---- inverse dynamics: split-K (no lane concat of [z, z_next]) ----------
    ih = relu(mm(z, w1k(4, L)) + mm(z_next, w1k(5, L)) + b1k(3))    # [B, H]
    ih = relu(mm(ih, w1k(6, H)) + b1k(4))                           # [B, H]
    act_ref[...] = mm(ih, w2k(3, A)) + b2k(3, A)                    # [B, A]

    # ---- decoder, applied once to the stacked [z; z_next; z_pred] -----------
    lat = jnp.concatenate([z_all, z_pred], axis=0)                  # [3B, L]
    lat_ref[...] = lat
    dh = relu(mm(lat, w1k(1, L)) + b1k(1))                          # [3B, H]
    dec_ref[...] = mm(dh, w2k(2, S)) + b2k(2, S)                    # [3B, S]


# ----------------------------------------------------------------------------
# Parameter construction (deterministic, PyTorch-default-style uniform init)
# ----------------------------------------------------------------------------
def _linear_params(key, fan_in, fan_out):
    """Returns (W[in,out], b[1,out]) like nn.Linear default init (transposed)."""
    kw, kb = jax.random.split(key)
    bound = 1.0 / jnp.sqrt(jnp.float32(fan_in))
    w = jax.random.uniform(kw, (fan_in, fan_out), jnp.float32, -bound, bound)
    b = jax.random.uniform(kb, (1, fan_out), jnp.float32, -bound, bound)
    return w, b


def init_upn_params(key, state_dim, action_dim, latent_dim, hidden=HIDDEN):
    keys = jax.random.split(key, 9)
    params = {}
    params["e1"] = _linear_params(keys[0], state_dim, hidden)
    params["e2"] = _linear_params(keys[1], hidden, latent_dim)
    params["d1"] = _linear_params(keys[2], latent_dim, hidden)
    params["d2"] = _linear_params(keys[3], hidden, state_dim)
    params["f1"] = _linear_params(keys[4], latent_dim + action_dim, hidden)
    params["f2"] = _linear_params(keys[5], hidden, latent_dim)
    params["i1"] = _linear_params(keys[6], 2 * latent_dim, hidden)
    params["i2"] = _linear_params(keys[7], hidden, hidden)
    params["i3"] = _linear_params(keys[8], hidden, action_dim)
    return params


# ----------------------------------------------------------------------------
# One-time packing of the 18 weight/bias arrays into 4 VMEM slabs.
# ----------------------------------------------------------------------------
def pack_upn_params(params):
    S, H = params["e1"][0].shape
    L = params["e2"][0].shape[1]
    A = params["i3"][0].shape[1]
    Kmax = max(S, L, A, H)
    Wmax = max(L, S, A)

    def pad_k(w):   # pad fan_in (rows) with zeros up to Kmax
        return jnp.pad(w, ((0, Kmax - w.shape[0]), (0, 0)))

    def pad_w(a):   # pad fan_out (cols) with zeros up to Wmax
        return jnp.pad(a, ((0, 0), (0, Wmax - a.shape[1])))

    f_w1 = params["f1"][0]   # [L+A, H] -> split for split-K
    i_w1 = params["i1"][0]   # [2L,  H] -> split for split-K

    w1 = jnp.stack([pad_k(params["e1"][0]),   # 0 e1  [S,H]
                    pad_k(params["d1"][0]),   # 1 d1  [L,H]
                    pad_k(f_w1[:L]),          # 2 f1_z
                    pad_k(f_w1[L:]),          # 3 f1_a
                    pad_k(i_w1[:L]),          # 4 i1_z
                    pad_k(i_w1[L:]),          # 5 i1_zn
                    pad_k(params["i2"][0])],  # 6 i2  [H,H]
                   axis=0)                    # [7, Kmax, H]

    b1 = jnp.concatenate([params["e1"][1], params["d1"][1], params["f1"][1],
                          params["i1"][1], params["i2"][1]], axis=0)  # [5, H]

    w2 = jnp.stack([pad_w(params["e2"][0]),   # 0 e2 [H,L]
                    pad_w(params["f2"][0]),   # 1 f2 [H,L]
                    pad_w(params["d2"][0]),   # 2 d2 [H,S]
                    pad_w(params["i3"][0])],  # 3 i3 [H,A]
                   axis=0)                    # [4, H, Wmax]

    b2 = jnp.concatenate([pad_w(params["e2"][1]), pad_w(params["f2"][1]),
                          pad_w(params["d2"][1]), pad_w(params["i3"][1])],
                         axis=0)              # [4, Wmax]

    return {"w1": w1, "b1": b1, "w2": w2, "b2": b2}


# ----------------------------------------------------------------------------
# Wrapper
# ----------------------------------------------------------------------------
@functools.partial(jax.jit, static_argnames=("latent_dim",))
def upn_forward(state, action, next_state, packed, *, latent_dim):
    B, S = state.shape
    A = action.shape[1]
    L = latent_dim

    # Stack the two encoder inputs in the wrapper (sublane stack, done by XLA).
    enc_in = jnp.concatenate([state, next_state], axis=0)   # [2B, S]

    out_shape = (
        jax.ShapeDtypeStruct((3 * B, L), jnp.float32),   # lat: [z; z_next; z_pred]
        jax.ShapeDtypeStruct((B, A), jnp.float32),       # action_pred
        jax.ShapeDtypeStruct((3 * B, S), jnp.float32),   # dec: [s_rec; ns_rec; ns_pred]
    )
    vmem = pl.BlockSpec(memory_space=pltpu.MemorySpace.VMEM)

    lat, action_pred, dec = pl.pallas_call(
        upn_kernel,
        out_shape=out_shape,
        in_specs=[vmem] * 6,
        out_specs=(vmem, vmem, vmem),
    )(enc_in, action, packed["w1"], packed["b1"], packed["w2"], packed["b2"])

    z = lat[:B]
    z_next = lat[B:2 * B]
    z_pred = lat[2 * B:]
    state_recon = dec[:B]             # decoder(z)
    next_state_recon = dec[B:2 * B]   # decoder(z_next)
    next_state_pred = dec[2 * B:]     # decoder(z_pred)
    return (z, z_next, z_pred, action_pred,
            state_recon, next_state_recon, next_state_pred)


# ----------------------------------------------------------------------------
# Pure-JAX reference (mirrors the PyTorch forward exactly)
# ----------------------------------------------------------------------------
def upn_reference(state, action, next_state, params):
    def lin(x, p):
        w, b = p
        return x @ w + b

    def mlp2(x, a, b):
        return lin(jnp.maximum(lin(x, a), 0.0), b)

    def mlp3(x, a, b, c):
        h = jnp.maximum(lin(x, a), 0.0)
        h = jnp.maximum(lin(h, b), 0.0)
        return lin(h, c)

    z = mlp2(state, params["e1"], params["e2"])
    z_next = mlp2(next_state, params["e1"], params["e2"])
    z_pred = mlp2(jnp.concatenate([z, action], -1), params["f1"], params["f2"])
    action_pred = mlp3(jnp.concatenate([z, z_next], -1),
                       params["i1"], params["i2"], params["i3"])
    state_recon = mlp2(z, params["d1"], params["d2"])
    next_state_pred = mlp2(z_pred, params["d1"], params["d2"])
    next_state_recon = mlp2(z_next, params["d1"], params["d2"])
    return (z, z_next, z_pred, action_pred,
            state_recon, next_state_recon, next_state_pred)


# ----------------------------------------------------------------------------
if __name__ == "__main__":
    batch = 8
    state_dim = 16
    action_dim = 4
    latent_dim = 8

    key = jax.random.PRNGKey(0)
    k_params, k_s, k_a, k_ns = jax.random.split(key, 4)

    params = init_upn_params(k_params, state_dim, action_dim, latent_dim)
    packed = pack_upn_params(params)   # one-time packing into 4 VMEM slabs

    state = jax.random.normal(k_s, (batch, state_dim), jnp.float32)
    action = jax.random.normal(k_a, (batch, action_dim), jnp.float32)
    next_state = jax.random.normal(k_ns, (batch, state_dim), jnp.float32)

    outs = upn_forward(state, action, next_state, packed, latent_dim=latent_dim)
    outs = jax.block_until_ready(outs)

    refs = upn_reference(state, action, next_state, params)
    names = ("z", "z_next", "z_pred", "action_pred",
             "state_recon", "next_state_recon", "next_state_pred")
    for name, o, r in zip(names, outs, refs):
        assert o.shape == r.shape, (name, o.shape, r.shape)
        assert jnp.allclose(o, r, atol=1e-4, rtol=1e-4), name

    print("KERNEL_OK")
</pallas_src>

<mosaic_0001>
module attributes {stable_mosaic.version = 11 : i64} {
  func.func @upn_kernel(%arg0: memref<16x16xf32, #tpu.memory_space<vmem>>, %arg1: memref<8x4xf32, #tpu.memory_space<vmem>>, %arg2: memref<7x64x64xf32, #tpu.memory_space<vmem>>, %arg3: memref<5x64xf32, #tpu.memory_space<vmem>>, %arg4: memref<4x64x16xf32, #tpu.memory_space<vmem>>, %arg5: memref<4x16xf32, #tpu.memory_space<vmem>>, %arg6: memref<24x8xf32, #tpu.memory_space<vmem>>, %arg7: memref<8x4xf32, #tpu.memory_space<vmem>>, %arg8: memref<24x16xf32, #tpu.memory_space<vmem>>) attributes {dimension_semantics = [], scalar_prefetch = 0 : i64, scratch_operands = 0 : i64, tpu.core_type = #tpu.core_type<tc>} {
    %c0 = arith.constant 0 : index
    %c0_0 = arith.constant 0 : index
    %0 = vector.load %arg0[%c0, %c0_0] : memref<16x16xf32, #tpu.memory_space<vmem>>, vector<16x16xf32>
    %c0_1 = arith.constant 0 : index
    %c0_2 = arith.constant 0 : index
    %1 = vector.load %arg1[%c0_1, %c0_2] : memref<8x4xf32, #tpu.memory_space<vmem>>, vector<8x4xf32>
    %c0_3 = arith.constant 0 : index
    %c0_4 = arith.constant 0 : index
    %c0_5 = arith.constant 0 : index
    %2 = vector.load %arg2[%c0_3, %c0_4, %c0_5] : memref<7x64x64xf32, #tpu.memory_space<vmem>>, vector<1x64x64xf32>
    %3 = vector.shape_cast %2 : vector<1x64x64xf32> to vector<64x64xf32>
    %4 = vector.extract_strided_slice %3 {offsets = [0, 0], sizes = [16, 64], strides = [1, 1]} : vector<64x64xf32> to vector<16x64xf32>
    %cst = arith.constant dense<0.000000e+00> : vector<16x64xf32>
    %5 = tpu.matmul %0, %4, %cst {dimension_numbers = #tpu.dot_dimension_numbers<[1], [0], [0], [1], [0, 0, 1, 1], [], []>} : vector<16x16xf32>, vector<16x64xf32>, vector<16x64xf32> -> vector<16x64xf32>
    %c0_6 = arith.constant 0 : index
    %c0_7 = arith.constant 0 : index
    %6 = vector.load %arg3[%c0_6, %c0_7] : memref<5x64xf32, #tpu.memory_space<vmem>>, vector<1x64xf32>
    %7 = vector.broadcast %6 : vector<1x64xf32> to vector<16x64xf32>
    %8 = arith.addf %5, %7 : vector<16x64xf32>
    %cst_8 = arith.constant 0.000000e+00 : f32
    %9 = vector.broadcast %cst_8 : f32 to vector<16x64xf32>
    %10 = arith.maximumf %8, %9 : vector<16x64xf32>
    %c0_9 = arith.constant 0 : index
    %c0_10 = arith.constant 0 : index
    %c0_11 = arith.constant 0 : index
    %11 = vector.load %arg4[%c0_9, %c0_10, %c0_11] : memref<4x64x16xf32, #tpu.memory_space<vmem>>, vector<1x64x16xf32>
    %12 = vector.shape_cast %11 : vector<1x64x16xf32> to vector<64x16xf32>
    %13 = vector.extract_strided_slice %12 {offsets = [0, 0], sizes = [64, 8], strides = [1, 1]} : vector<64x16xf32> to vector<64x8xf32>
    %cst_12 = arith.constant dense<0.000000e+00> : vector<16x8xf32>
    %14 = tpu.matmul %10, %13, %cst_12 {dimension_numbers = #tpu.dot_dimension_numbers<[1], [0], [0], [1], [0, 0, 1, 1], [], []>} : vector<16x64xf32>, vector<64x8xf32>, vector<16x8xf32> -> vector<16x8xf32>
    %c0_13 = arith.constant 0 : index
    %c0_14 = arith.constant 0 : index
    %15 = vector.load %arg5[%c0_13, %c0_14] : memref<4x16xf32, #tpu.memory_space<vmem>>, vector<1x8xf32>
    %16 = vector.broadcast %15 : vector<1x8xf32> to vector<16x8xf32>
    %17 = arith.addf %14, %16 : vector<16x8xf32>
    %18 = vector.extract_strided_slice %17 {offsets = [0, 0], sizes = [8, 8], strides = [1, 1]} : vector<16x8xf32> to vector<8x8xf32>
    %19 = vector.extract_strided_slice %17 {offsets = [8, 0], sizes = [8, 8], strides = [1, 1]} : vector<16x8xf32> to vector<8x8xf32>
    %c2 = arith.constant 2 : index
    %c0_15 = arith.constant 0 : index
    %c0_16 = arith.constant 0 : index
    %20 = vector.load %arg2[%c2, %c0_15, %c0_16] : memref<7x64x64xf32, #tpu.memory_space<vmem>>, vector<1x64x64xf32>
    %21 = vector.shape_cast %20 : vector<1x64x64xf32> to vector<64x64xf32>
    %22 = vector.extract_strided_slice %21 {offsets = [0, 0], sizes = [8, 64], strides = [1, 1]} : vector<64x64xf32> to vector<8x64xf32>
    %cst_17 = arith.constant dense<0.000000e+00> : vector<8x64xf32>
    %23 = tpu.matmul %18, %22, %cst_17 {dimension_numbers = #tpu.dot_dimension_numbers<[1], [0], [0], [1], [0, 0, 1, 1], [], []>} : vector<8x8xf32>, vector<8x64xf32>, vector<8x64xf32> -> vector<8x64xf32>
    %c3 = arith.constant 3 : index
    %c0_18 = arith.constant 0 : index
    %c0_19 = arith.constant 0 : index
    %24 = vector.load %arg2[%c3, %c0_18, %c0_19] : memref<7x64x64xf32, #tpu.memory_space<vmem>>, vector<1x64x64xf32>
    %25 = vector.shape_cast %24 : vector<1x64x64xf32> to vector<64x64xf32>
    %26 = vector.extract_strided_slice %25 {offsets = [0, 0], sizes = [4, 64], strides = [1, 1]} : vector<64x64xf32> to vector<4x64xf32>
    %cst_20 = arith.constant dense<0.000000e+00> : vector<8x64xf32>
    %27 = tpu.matmul %1, %26, %cst_20 {dimension_numbers = #tpu.dot_dimension_numbers<[1], [0], [0], [1], [0, 0, 1, 1], [], []>} : vector<8x4xf32>, vector<4x64xf32>, vector<8x64xf32> -> vector<8x64xf32>
    %28 = arith.addf %23, %27 : vector<8x64xf32>
    %c2_21 = arith.constant 2 : index
    %c0_22 = arith.constant 0 : index
    %29 = vector.load %arg3[%c2_21, %c0_22] : memref<5x64xf32, #tpu.memory_space<vmem>>, vector<1x64xf32>
    %30 = vector.broadcast %29 : vector<1x64xf32> to vector<8x64xf32>
    %31 = arith.addf %28, %30 : vector<8x64xf32>
    %cst_23 = arith.constant 0.000000e+00 : f32
    %32 = vector.broadcast %cst_23 : f32 to vector<8x64xf32>
    %33 = arith.maximumf %31, %32 : vector<8x64xf32>
    %c1 = arith.constant 1 : index
    %c0_24 = arith.constant 0 : index
    %c0_25 = arith.constant 0 : index
    %34 = vector.load %arg4[%c1, %c0_24, %c0_25] : memref<4x64x16xf32, #tpu.memory_space<vmem>>, vector<1x64x16xf32>
    %35 = vector.shape_cast %34 : vector<1x64x16xf32> to vector<64x16xf32>
    %36 = vector.extract_strided_slice %35 {offsets = [0, 0], sizes = [64, 8], strides = [1, 1]} : vector<64x16xf32> to vector<64x8xf32>
    %cst_26 = arith.constant dense<0.000000e+00> : vector<8x8xf32>
    %37 = tpu.matmul %33, %36, %cst_26 {dimension_numbers = #tpu.dot_dimension_numbers<[1], [0], [0], [1], [0, 0, 1, 1], [], []>} : vector<8x64xf32>, vector<64x8xf32>, vector<8x8xf32> -> vector<8x8xf32>
    %c1_27 = arith.constant 1 : index
    %c0_28 = arith.constant 0 : index
    %38 = vector.load %arg5[%c1_27, %c0_28] : memref<4x16xf32, #tpu.memory_space<vmem>>, vector<1x8xf32>
    %39 = vector.broadcast %38 : vector<1x8xf32> to vector<8x8xf32>
    %40 = arith.addf %37, %39 : vector<8x8xf32>
    %c4 = arith.constant 4 : index
    %c0_29 = arith.constant 0 : index
    %c0_30 = arith.constant 0 : index
    %41 = vector.load %arg2[%c4, %c0_29, %c0_30] : memref<7x64x64xf32, #tpu.memory_space<vmem>>, vector<1x64x64xf32>
    %42 = vector.shape_cast %41 : vector<1x64x64xf32> to vector<64x64xf32>
    %43 = vector.extract_strided_slice %42 {offsets = [0, 0], sizes = [8, 64], strides = [1, 1]} : vector<64x64xf32> to vector<8x64xf32>
    %cst_31 = arith.constant dense<0.000000e+00> : vector<8x64xf32>
    %44 = tpu.matmul %18, %43, %cst_31 {dimension_numbers = #tpu.dot_dimension_numbers<[1], [0], [0], [1], [0, 0, 1, 1], [], []>} : vector<8x8xf32>, vector<8x64xf32>, vector<8x64xf32> -> vector<8x64xf32>
    %c5 = arith.constant 5 : index
    %c0_32 = arith.constant 0 : index
    %c0_33 = arith.constant 0 : index
    %45 = vector.load %arg2[%c5, %c0_32, %c0_33] : memref<7x64x64xf32, #tpu.memory_space<vmem>>, vector<1x64x64xf32>
    %46 = vector.shape_cast %45 : vector<1x64x64xf32> to vector<64x64xf32>
    %47 = vector.extract_strided_slice %46 {offsets = [0, 0], sizes = [8, 64], strides = [1, 1]} : vector<64x64xf32> to vector<8x64xf32>
    %cst_34 = arith.constant dense<0.000000e+00> : vector<8x64xf32>
    %48 = tpu.matmul %19, %47, %cst_34 {dimension_numbers = #tpu.dot_dimension_numbers<[1], [0], [0], [1], [0, 0, 1, 1], [], []>} : vector<8x8xf32>, vector<8x64xf32>, vector<8x64xf32> -> vector<8x64xf32>
    %49 = arith.addf %44, %48 : vector<8x64xf32>
    %c3_35 = arith.constant 3 : index
    %c0_36 = arith.constant 0 : index
    %50 = vector.load %arg3[%c3_35, %c0_36] : memref<5x64xf32, #tpu.memory_space<vmem>>, vector<1x64xf32>
    %51 = vector.broadcast %50 : vector<1x64xf32> to vector<8x64xf32>
    %52 = arith.addf %49, %51 : vector<8x64xf32>
    %cst_37 = arith.constant 0.000000e+00 : f32
    %53 = vector.broadcast %cst_37 : f32 to vector<8x64xf32>
    %54 = arith.maximumf %52, %53 : vector<8x64xf32>
    %c6 = arith.constant 6 : index
    %c0_38 = arith.constant 0 : index
    %c0_39 = arith.constant 0 : index
    %55 = vector.load %arg2[%c6, %c0_38, %c0_39] : memref<7x64x64xf32, #tpu.memory_space<vmem>>, vector<1x64x64xf32>
    %56 = vector.shape_cast %55 : vector<1x64x64xf32> to vector<64x64xf32>
    %cst_40 = arith.constant dense<0.000000e+00> : vector<8x64xf32>
    %57 = tpu.matmul %54, %56, %cst_40 {dimension_numbers = #tpu.dot_dimension_numbers<[1], [0], [0], [1], [0, 0, 1, 1], [], []>} : vector<8x64xf32>, vector<64x64xf32>, vector<8x64xf32> -> vector<8x64xf32>
    %c4_41 = arith.constant 4 : index
    %c0_42 = arith.constant 0 : index
    %58 = vector.load %arg3[%c4_41, %c0_42] : memref<5x64xf32, #tpu.memory_space<vmem>>, vector<1x64xf32>
    %59 = vector.broadcast %58 : vector<1x64xf32> to vector<8x64xf32>
    %60 = arith.addf %57, %59 : vector<8x64xf32>
    %cst_43 = arith.constant 0.000000e+00 : f32
    %61 = vector.broadcast %cst_43 : f32 to vector<8x64xf32>
    %62 = arith.maximumf %60, %61 : vector<8x64xf32>
    %c3_44 = arith.constant 3 : index
    %c0_45 = arith.constant 0 : index
    %c0_46 = arith.constant 0 : index
    %63 = vector.load %arg4[%c3_44, %c0_45, %c0_46] : memref<4x64x16xf32, #tpu.memory_space<vmem>>, vector<1x64x16xf32>
    %64 = vector.shape_cast %63 : vector<1x64x16xf32> to vector<64x16xf32>
    %65 = vector.extract_strided_slice %64 {offsets = [0, 0], sizes = [64, 4], strides = [1, 1]} : vector<64x16xf32> to vector<64x4xf32>
    %cst_47 = arith.constant dense<0.000000e+00> : vector<8x4xf32>
    %66 = tpu.matmul %62, %65, %cst_47 {dimension_numbers = #tpu.dot_dimension_numbers<[1], [0], [0], [1], [0, 0, 1, 1], [], []>} : vector<8x64xf32>, vector<64x4xf32>, vector<8x4xf32> -> vector<8x4xf32>
    %c3_48 = arith.constant 3 : index
    %c0_49 = arith.constant 0 : index
    %67 = vector.load %arg5[%c3_48, %c0_49] : memref<4x16xf32, #tpu.memory_space<vmem>>, vector<1x4xf32>
    %68 = vector.broadcast %67 : vector<1x4xf32> to vector<8x4xf32>
    %69 = arith.addf %66, %68 : vector<8x4xf32>
    %c0_50 = arith.constant 0 : index
    %c0_51 = arith.constant 0 : index
    %70 = vector.load %arg7[%c0_50, %c0_51] : memref<8x4xf32, #tpu.memory_space<vmem>>, vector<8x4xf32>
    tpu.vector_store %arg7[%c0_50, %c0_51], %69 {strides = array<i32>} : memref<8x4xf32, #tpu.memory_space<vmem>>, vector<8x4xf32>,
    %71 = tpu.concatenate %17, %40 in 0 : vector<16x8xf32>, vector<8x8xf32> -> vector<24x8xf32>
    %c0_52 = arith.constant 0 : index
    %c0_53 = arith.constant 0 : index
    %72 = vector.load %arg6[%c0_52, %c0_53] : memref<24x8xf32, #tpu.memory_space<vmem>>, vector<24x8xf32>
    tpu.vector_store %arg6[%c0_52, %c0_53], %71 {strides = array<i32>} : memref<24x8xf32, #tpu.memory_space<vmem>>, vector<24x8xf32>,
    %c1_54 = arith.constant 1 : index
    %c0_55 = arith.constant 0 : index
    %c0_56 = arith.constant 0 : index
    %73 = vector.load %arg2[%c1_54, %c0_55, %c0_56] : memref<7x64x64xf32, #tpu.memory_space<vmem>>, vector<1x64x64xf32>
    %74 = vector.shape_cast %73 : vector<1x64x64xf32> to vector<64x64xf32>
    %75 = vector.extract_strided_slice %74 {offsets = [0, 0], sizes = [8, 64], strides = [1, 1]} : vector<64x64xf32> to vector<8x64xf32>
    %cst_57 = arith.constant dense<0.000000e+00> : vector<24x64xf32>
    %76 = tpu.matmul %71, %75, %cst_57 {dimension_numbers = #tpu.dot_dimension_numbers<[1], [0], [0], [1], [0, 0, 1, 1], [], []>} : vector<24x8xf32>, vector<8x64xf32>, vector<24x64xf32> -> vector<24x64xf32>
    %c1_58 = arith.constant 1 : index
    %c0_59 = arith.constant 0 : index
    %77 = vector.load %arg3[%c1_58, %c0_59] : memref<5x64xf32, #tpu.memory_space<vmem>>, vector<1x64xf32>
    %78 = vector.broadcast %77 : vector<1x64xf32> to vector<24x64xf32>
    %79 = arith.addf %76, %78 : vector<24x64xf32>
    %cst_60 = arith.constant 0.000000e+00 : f32
    %80 = vector.broadcast %cst_60 : f32 to vector<24x64xf32>
    %81 = arith.maximumf %79, %80 : vector<24x64xf32>
    %c2_61 = arith.constant 2 : index
    %c0_62 = arith.constant 0 : index
    %c0_63 = arith.constant 0 : index
    %82 = vector.load %arg4[%c2_61, %c0_62, %c0_63] : memref<4x64x16xf32, #tpu.memory_space<vmem>>, vector<1x64x16xf32>
    %83 = vector.shape_cast %82 : vector<1x64x16xf32> to vector<64x16xf32>
    %cst_64 = arith.constant dense<0.000000e+00> : vector<24x16xf32>
    %84 = tpu.matmul %81, %83, %cst_64 {dimension_numbers = #tpu.dot_dimension_numbers<[1], [0], [0], [1], [0, 0, 1, 1], [], []>} : vector<24x64xf32>, vector<64x16xf32>, vector<24x16xf32> -> vector<24x16xf32>
    %c2_65 = arith.constant 2 : index
    %c0_66 = arith.constant 0 : index
    %85 = vector.load %arg5[%c2_65, %c0_66] : memref<4x16xf32, #tpu.memory_space<vmem>>, vector<1x16xf32>
    %86 = vector.broadcast %85 : vector<1x16xf32> to vector<24x16xf32>
    %87 = arith.addf %84, %86 : vector<24x16xf32>
    %c0_67 = arith.constant 0 : index
    %c0_68 = arith.constant 0 : index
    %88 = vector.load %arg8[%c0_67, %c0_68] : memref<24x16xf32, #tpu.memory_space<vmem>>, vector<24x16xf32>
    tpu.vector_store %arg8[%c0_67, %c0_68], %87 {strides = array<i32>} : memref<24x16xf32, #tpu.memory_space<vmem>>, vector<24x16xf32>,
    return
  }
}

</mosaic_0001>

<llo_original>
// kernel: upn_forward.1
$region0: #{upn_forward.1}
  #allocation0 [shape = 'u32[]', space=smem, size = 0x4, offset = 0x4, fixed_abs, tag = 'smem constant byte address 0x4 - core index']
  #allocation1 [shape = 'u32[144,128]{1,0:T(1,128)}', space=vmem, size = 0x12000, scoped, tag = 'internal scratch']
  %s0 = inlined_call_operand.vmem [shape: f32[16,16], index: 0, kind: input, shape index: {}]
  %s1 = inlined_call_operand.vmem [shape: f32[8,4], index: 1, kind: input, shape index: {}]
  %s2 = inlined_call_operand.hbm [shape: f32[7,64,64], index: 2, kind: input, shape index: {}]
  %s3 = inlined_call_operand.vmem [shape: f32[5,64], index: 3, kind: input, shape index: {}]
  %s4 = inlined_call_operand.vmem [shape: f32[4,64,16], index: 4, kind: input, shape index: {}]
  %s5 = inlined_call_operand.vmem [shape: f32[4,16], index: 5, kind: input, shape index: {}]
  %s6 = inlined_call_operand.vmem [shape: f32[24,8], index: 6, kind: output, shape index: {0}]
  %s7 = inlined_call_operand.vmem [shape: f32[8,4], index: 7, kind: output, shape index: {1}]
  %s8 = inlined_call_operand.vmem [shape: f32[24,16], index: 8, kind: output, shape index: {2}]
  %9 = xla_tuple %s6, %s7, %s8
  %s10 = sld [smem:[#allocation0]]
  $region54: #{upn_forward.1} parent=0
    _
  %s12 = ssub.s32 1, %s10
  %s13 = scalar_select 0, %s12, %s10
  $region1: #{upn_forward.1} parent=0
    #allocation2 [shape = 'u8[229376]{0}', space=vmem, size = 0x38000, scoped, tag = 'input window, operand 2, single buffered']
    #allocation3 [shape = 's32[1]{0}', space=sflag, size = 0x4, scoped, tag = 'scoped memory for upn_forward.1']
    %14 = vsyncpa [#allocation3], 0
    // Predicated region
    $region2: #{upn_forward.1} parent=1 // pred_check
      _
    $region3: #{upn_forward.1} parent=1 // pred_check_branch
      %16 = sbr.rel (0) target = $region5
    $region4: #{upn_forward.1} parent=1 // pred_region
      _
    $region5: #{upn_forward.1} parent=1 // pred_fallthru
      _
    // Predicated region
    $region6: #{upn_forward.1} parent=1 // pred_check
      _
    $region7: #{upn_forward.1} parent=1 // pred_check_branch
      %18 = sbr.rel (0) target = $region9
    $region8: #{upn_forward.1} parent=1 // pred_region
      _
    $region9: #{upn_forward.1} parent=1 // pred_fallthru
      _
    // Predicated region
    $region10: #{upn_forward.1} parent=1 // pred_check
      _
    $region11: #{upn_forward.1} parent=1 // pred_check_branch
      %20 = sbr.rel (0) target = $region13
    $region12: #{upn_forward.1} parent=1 // pred_region
      %s22 = ssub.s32 7168, 7168
      %23 = vsyncadd [#allocation3], %s22
      %s24 = sshll.u32 [#allocation2], 4
      %s25 = int_to_ptr.vmem [resolvable:$true] %s24
      %30 = dma.hbm_to_vmem [thread:$0]  %s2, 7168, %s25, [#allocation3], 128, 128, 8
    $region13: #{upn_forward.1} parent=1 // pred_fallthru
      _
    // Predicated region
    $region14: #{upn_forward.1} parent=1 // pred_check
      _
    $region15: #{upn_forward.1} parent=1 // pred_check_branch
      %32 = sbr.rel (0) target = $region17
    $region16: #{upn_forward.1} parent=1 // pred_region
      _
    $region17: #{upn_forward.1} parent=1 // pred_fallthru
      _
    // Predicated region
    $region18: #{upn_forward.1} parent=1 // pred_check
      _
    $region19: #{upn_forward.1} parent=1 // pred_check_branch
      %34 = sbr.rel (0) target = $region21
    $region20: #{upn_forward.1} parent=1 // pred_region
      _
    $region21: #{upn_forward.1} parent=1 // pred_fallthru
      _
    // Predicated region
    $region22: #{upn_forward.1} parent=1 // pred_check
      _
    $region23: #{upn_forward.1} parent=1 // pred_check_branch
      %36 = sbr.rel (0) target = $region25
    $region24: #{upn_forward.1} parent=1 // pred_region
      _
    $region25: #{upn_forward.1} parent=1 // pred_fallthru
      _
    // Predicated region
    $region26: #{upn_forward.1} parent=1 // pred_check
      _
    $region27: #{upn_forward.1} parent=1 // pred_check_branch
      %38 = sbr.rel (0) target = $region29
    $region28: #{upn_forward.1} parent=1 // pred_region
      %39 = dma.done [#allocation3], 7168
    $region29: #{upn_forward.1} parent=1 // pred_fallthru
      _
    %v40 = vld [vmem:[%s0] sm:$0xff]
    %v41 = vld [vmem:[%s0 + $0x8] sm:$0xff]
    %v42 = vld [vmem:[%s1] sm:$0xff]
    %v43 = vld [vmem:[#allocation2] sm:$0xff]
    %v44 = vld [vmem:[#allocation2 + $0x8] sm:$0xff]
    %v45 = vld [vmem:[%s3] sm:$0x1]
    %v46 = vlaneseq
    %v47 = vshrl.u32 %v46, 7
    %v48 = vsub.s32 0, %v47
    %v49 = vrot.slane %v45, %v48
    %vm50 = vcmask 130048
    %v52 = vsel %vm50, %v40, 0
    %v55 = vsel %vm50, %v41, 0
    %57 = vmatprep.subr.mxu0 0.0
    %58 = vmatpush1.msra.mxu0 %v43
    %59 = vmatprep.subr.mxu0 0.0
    %60 = vmatpush1.msra.mxu0 %v44
    %61 = vmatprep.subr.mxu0 0.0
    %62 = vmatpush1.msra.mxu0 0.0
    %63 = vmatprep.subr.mxu0 0.0
    %64 = vmatpush1.msra.mxu0 0.0
    %65 = vmatprep.subr.mxu0 0.0
    %66 = vmatpush1.msra.mxu0 0.0
    %67 = vmatprep.subr.mxu0 0.0
    %68 = vmatpush1.msra.mxu0 0.0
    %69 = vmatprep.subr.mxu0 0.0
    %70 = vmatpush1.msra.mxu0 0.0
    %71 = vmatprep.subr.mxu0 0.0
    %72 = vmatpush1.msra.mxu0 0.0
    %73 = vmatprep.subr.mxu0 0.0
    %74 = vmatpush1.msra.mxu0 0.0
    %75 = vmatprep.subr.mxu0 0.0
    %76 = vmatpush1.msra.mxu0 0.0
    %77 = vmatprep.subr.mxu0 0.0
    %78 = vmatpush1.msra.mxu0 0.0
    %79 = vmatprep.subr.mxu0 0.0
    %80 = vmatpush1.msra.mxu0 0.0
    %81 = vmatprep.subr.mxu0 0.0
    %82 = vmatpush1.msra.mxu0 0.0
    %83 = vmatprep.subr.mxu0 0.0
    %84 = vmatpush1.msra.mxu0 0.0
    %85 = vmatprep.subr.mxu0 0.0
    %86 = vmatpush1.msra.mxu0 0.0
    %87 = vmatprep.subr.mxu0 0.0
    %88 = vmatpush1.msra.mxu0 0.0
    %89 = vmatprep.subr.mxu0 0.0
    %90 = vmatpush1.msra.mxu0 0.0
    %91 = vmatprep.subr.mxu0 0.0
    %92 = vmatpush1.msra.mxu0 0.0
    %93 = vmatprep.subr.mxu0 0.0
    %94 = vmatpush1.msra.mxu0 0.0
    %95 = vmatprep.subr.mxu0 0.0
    %96 = vmatpush1.msra.mxu0 0.0
    %97 = vmatprep.subr.mxu0 0.0
    %98 = vmatpush1.msra.mxu0 0.0
    %99 = vmatprep.subr.mxu0 0.0
    %100 = vmatpush1.msra.mxu0 0.0
    %101 = vmatprep.subr.mxu0 0.0
    %102 = vmatpush1.msra.mxu0 0.0
    %103 = vmatprep.subr.mxu0 0.0
    %104 = vmatpush1.msra.mxu0 0.0
    %105 = vmatprep.subr.mxu0 0.0
    %106 = vmatpush1.msra.mxu0 0.0
    %107 = vmatprep.subr.mxu0 0.0
    %108 = vmatpush1.msra.mxu0 0.0
    %109 = vmatprep.subr.mxu0 0.0
    %110 = vmatpush1.msra.mxu0 0.0
    %111 = vmatprep.subr.mxu0 0.0
    %112 = vmatpush1.msra.mxu0 0.0
    %113 = vmatprep.subr.mxu0 0.0
    %114 = vmatpush1.msra.mxu0 0.0
    %115 = vmatprep.subr.mxu0 0.0
    %116 = vmatpush1.msra.mxu0 0.0
    %117 = vmatprep.subr.mxu0 0.0
    %118 = vmatpush1.msra.mxu0 0.0
    %119 = vmatprep.subr.mxu0 0.0
    %120 = vmatpush1.msra.mxu0 0.0
    %121 = vmatprep.mubr.f32.mxu0 0.0
    %122 = vmatmul.mubr.f32.gmra.mrb[0].mxu0 %v52
    %v123 = vpop.f32.mrb[0].mxu0
    %v124 = vadd.f32 %v49, %v123
    %v125 = vpop.f32.mrb[0].mxu0
    %126 = vmatprep.mubr.f32.mxu0 0.0
    %127 = vmatmul.mubr.f32.gmra.mrb[0].mxu0 %v55
    %v128 = vpop.f32.mrb[0].mxu0
    %v129 = vadd.f32 %v49, %v128
    %v130 = vpop.f32.mrb[0].mxu0
    %131 = vdwg.mxu0
    %v132 = vmax.f32 %v124, 0.0
    %v133 = vmax.f32 %v129, 0.0
    %v134 = vld [vmem:[%s4] sm:$0xff]
    %v135 = vld [vmem:[%s4 + $0x8] sm:$0xff]
    %v136 = vld [vmem:[%s4 + $0x10] sm:$0xff]
    %v137 = vld [vmem:[%s4 + $0x18] sm:$0xff]
    %v138 = vld [vmem:[%s4 + $0x20] sm:$0xff]
    %v139 = vld [vmem:[%s4 + $0x28] sm:$0xff]
    %v140 = vld [vmem:[%s4 + $0x30] sm:$0xff]
    %v141 = vld [vmem:[%s4 + $0x38] sm:$0xff]
    %v142 = vld [vmem:[%s5] sm:$0x1]
    %v143 = vlaneseq
    %v144 = vshrl.u32 %v143, 7
    %v145 = vsub.s32 0, %v144
    %v146 = vrot.slane %v142, %v145
    %vm147 = vcmask 523264
    %v149 = vsel %vm147, %v132, 0
    %v152 = vsel %vm147, %v133, 0
    %154 = vmatprep.subr.mxu0 0.0
    %155 = vmatpush1.msra.mxu0 %v134
    %156 = vmatprep.subr.mxu0 0.0
    %157 = vmatpush1.msra.mxu0 %v135
    %158 = vmatprep.subr.mxu0 0.0
    %159 = vmatpush1.msra.mxu0 %v136
    %160 = vmatprep.subr.mxu0 0.0
    %161 = vmatpush1.msra.mxu0 %v137
    %162 = vmatprep.subr.mxu0 0.0
    %163 = vmatpush1.msra.mxu0 %v138
    %164 = vmatprep.subr.mxu0 0.0
    %165 = vmatpush1.msra.mxu0 %v139
    %166 = vmatprep.subr.mxu0 0.0
    %167 = vmatpush1.msra.mxu0 %v140
    %168 = vmatprep.subr.mxu0 0.0
    %169 = vmatpush1.msra.mxu0 %v141
    %170 = vmatprep.subr.mxu0 0.0
    %171 = vmatpush1.msra.mxu0 0.0
    %172 = vmatprep.subr.mxu0 0.0
    %173 = vmatpush1.msra.mxu0 0.0
    %174 = vmatprep.subr.mxu0 0.0
    %175 = vmatpush1.msra.mxu0 0.0
    %176 = vmatprep.subr.mxu0 0.0
    %177 = vmatpush1.msra.mxu0 0.0
    %178 = vmatprep.subr.mxu0 0.0
    %179 = vmatpush1.msra.mxu0 0.0
    %180 = vmatprep.subr.mxu0 0.0
    %181 = vmatpush1.msra.mxu0 0.0
    %182 = vmatprep.subr.mxu0 0.0
    %183 = vmatpush1.msra.mxu0 0.0
    %184 = vmatprep.subr.mxu0 0.0
    %185 = vmatpush1.msra.mxu0 0.0
    %186 = vmatprep.subr.mxu0 0.0
    %187 = vmatpush1.msra.mxu0 0.0
    %188 = vmatprep.subr.mxu0 0.0
    %189 = vmatpush1.msra.mxu0 0.0
    %190 = vmatprep.subr.mxu0 0.0
    %191 = vmatpush1.msra.mxu0 0.0
    %192 = vmatprep.subr.mxu0 0.0
    %193 = vmatpush1.msra.mxu0 0.0
    %194 = vmatprep.subr.mxu0 0.0
    %195 = vmatpush1.msra.mxu0 0.0
    %196 = vmatprep.subr.mxu0 0.0
    %197 = vmatpush1.msra.mxu0 0.0
    %198 = vmatprep.subr.mxu0 0.0
    %199 = vmatpush1.msra.mxu0 0.0
    %200 = vmatprep.subr.mxu0 0.0
    %201 = vmatpush1.msra.mxu0 0.0
    %202 = vmatprep.subr.mxu0 0.0
    %203 = vmatpush1.msra.mxu0 0.0
    %204 = vmatprep.subr.mxu0 0.0
    %205 = vmatpush1.msra.mxu0 0.0
    %206 = vmatprep.subr.mxu0 0.0
    %207 = vmatpush1.msra.mxu0 0.0
    %208 = vmatprep.subr.mxu0 0.0
    %209 = vmatpush1.msra.mxu0 0.0
    %210 = vmatprep.subr.mxu0 0.0
    %211 = vmatpush1.msra.mxu0 0.0
    %212 = vmatprep.subr.mxu0 0.0
    %213 = vmatpush1.msra.mxu0 0.0
    %214 = vmatprep.subr.mxu0 0.0
    %215 = vmatpush1.msra.mxu0 0.0
    %216 = vmatprep.subr.mxu0 0.0
    %217 = vmatpush1.msra.mxu0 0.0
    %218 = vmatprep.mubr.f32.mxu0 0.0
    %219 = vmatmul.mubr.f32.gmra.mrb[0].mxu0 %v149
    %v220 = vpop.f32.mrb[0].mxu0
    %v221 = vadd.f32 %v146, %v220
    %v222 = vpop.f32.mrb[0].mxu0
    %223 = vmatprep.mubr.f32.mxu0 0.0
    %224 = vmatmul.mubr.f32.gmra.mrb[0].mxu0 %v152
    %v225 = vpop.f32.mrb[0].mxu0
    %v226 = vadd.f32 %v146, %v225
    %v227 = vpop.f32.mrb[0].mxu0
    %228 = vdwg.mxu0
    %s229 = scalar_lea.vmem [#allocation2], 128
    %v230 = vld [vmem:[%s229] sm:$0xff]
    %s231 = scalar_lea.vmem [#allocation2], 192
    %v232 = vld [vmem:[%s231] sm:$0xff]
    %vm233 = vcmask 31744
    %v235 = vsel %vm233, %v42, 0
    %vm237 = vcmask 1043456
    %v239 = vsel %vm237, %v232, 0
    %241 = vmatprep.subr.mxu0 0.0
    %242 = vmatpush1.msra.mxu0 %v239
    %243 = vmatprep.subr.mxu0 0.0
    %244 = vmatpush1.msra.mxu0 0.0
    %245 = vmatprep.subr.mxu0 0.0
    %246 = vmatpush1.msra.mxu0 0.0
    %247 = vmatprep.subr.mxu0 0.0
    %248 = vmatpush1.msra.mxu0 0.0
    %249 = vmatprep.subr.mxu0 0.0
    %250 = vmatpush1.msra.mxu0 0.0
    %251 = vmatprep.subr.mxu0 0.0
    %252 = vmatpush1.msra.mxu0 0.0
    %253 = vmatprep.subr.mxu0 0.0
    %254 = vmatpush1.msra.mxu0 0.0
    %255 = vmatprep.subr.mxu0 0.0
    %256 = vmatpush1.msra.mxu0 0.0
    %257 = vmatprep.subr.mxu0 0.0
    %258 = vmatpush1.msra.mxu0 0.0
    %259 = vmatprep.subr.mxu0 0.0
    %260 = vmatpush1.msra.mxu0 0.0
    %261 = vmatprep.subr.mxu0 0.0
    %262 = vmatpush1.msra.mxu0 0.0
    %263 = vmatprep.subr.mxu0 0.0
    %264 = vmatpush1.msra.mxu0 0.0
    %265 = vmatprep.subr.mxu0 0.0
    %266 = vmatpush1.msra.mxu0 0.0
    %267 = vmatprep.subr.mxu0 0.0
    %268 = vmatpush1.msra.mxu0 0.0
    %269 = vmatprep.subr.mxu0 0.0
    %270 = vmatpush1.msra.mxu0 0.0
    %271 = vmatprep.subr.mxu0 0.0
    %272 = vmatpush1.msra.mxu0 0.0
    %273 = vmatprep.subr.mxu0 0.0
    %274 = vmatpush1.msra.mxu0 0.0
    %275 = vmatprep.subr.mxu0 0.0
    %276 = vmatpush1.msra.mxu0 0.0
    %277 = vmatprep.subr.mxu0 0.0
    %278 = vmatpush1.msra.mxu0 0.0
    %279 = vmatprep.subr.mxu0 0.0
    %280 = vmatpush1.msra.mxu0 0.0
    %281 = vmatprep.subr.mxu0 0.0
    %282 = vmatpush1.msra.mxu0 0.0
    %283 = vmatprep.subr.mxu0 0.0
    %284 = vmatpush1.msra.mxu0 0.0
    %285 = vmatprep.subr.mxu0 0.0
    %286 = vmatpush1.msra.mxu0 0.0
    %287 = vmatprep.subr.mxu0 0.0
    %288 = vmatpush1.msra.mxu0 0.0
    %289 = vmatprep.subr.mxu0 0.0
    %290 = vmatpush1.msra.mxu0 0.0
    %291 = vmatprep.subr.mxu0 0.0
    %292 = vmatpush1.msra.mxu0 0.0
    %293 = vmatprep.subr.mxu0 0.0
    %294 = vmatpush1.msra.mxu0 0.0
    %295 = vmatprep.subr.mxu0 0.0
    %296 = vmatpush1.msra.mxu0 0.0
    %297 = vmatprep.subr.mxu0 0.0
    %298 = vmatpush1.msra.mxu0 0.0
    %299 = vmatprep.subr.mxu0 0.0
    %300 = vmatpush1.msra.mxu0 0.0
    %301 = vmatprep.subr.mxu0 0.0
    %302 = vmatpush1.msra.mxu0 0.0
    %303 = vmatprep.subr.mxu0 0.0
    %304 = vmatpush1.msra.mxu0 0.0
    %305 = vmatprep.mubr.f32.mxu0 0.0
    %306 = vmatmul.mubr.f32.gmra.mrb[0].mxu0 %v235
    %v307 = vpop.f32.mrb[0].mxu0
    %v308 = vadd.f32 0.0, %v307
    %v309 = vpop.f32.mrb[0].mxu0
    %310 = vdwg.mxu0
    %vm311 = vcmask 64512
    %v313 = vsel %vm311, %v221, 0
    %315 = vmatprep.subr.mxu0 0.0
    %316 = vmatpush1.msra.mxu0 %v230
    %317 = vmatprep.subr.mxu0 0.0
    %318 = vmatpush1.msra.mxu0 0.0
    %319 = vmatprep.subr.mxu0 0.0
    %320 = vmatpush1.msra.mxu0 0.0
    %321 = vmatprep.subr.mxu0 0.0
    %322 = vmatpush1.msra.mxu0 0.0
    %323 = vmatprep.subr.mxu0 0.0
    %324 = vmatpush1.msra.mxu0 0.0
    %325 = vmatprep.subr.mxu0 0.0
    %326 = vmatpush1.msra.mxu0 0.0
    %327 = vmatprep.subr.mxu0 0.0
    %328 = vmatpush1.msra.mxu0 0.0
    %329 = vmatprep.subr.mxu0 0.0
    %330 = vmatpush1.msra.mxu0 0.0
    %331 = vmatprep.subr.mxu0 0.0
    %332 = vmatpush1.msra.mxu0 0.0
    %333 = vmatprep.subr.mxu0 0.0
    %334 = vmatpush1.msra.mxu0 0.0
    %335 = vmatprep.subr.mxu0 0.0
    %336 = vmatpush1.msra.mxu0 0.0
    %337 = vmatprep.subr.mxu0 0.0
    %338 = vmatpush1.msra.mxu0 0.0
    %339 = vmatprep.subr.mxu0 0.0
    %340 = vmatpush1.msra.mxu0 0.0
    %341 = vmatprep.subr.mxu0 0.0
    %342 = vmatpush1.msra.mxu0 0.0
    %343 = vmatprep.subr.mxu0 0.0
    %344 = vmatpush1.msra.mxu0 0.0
    %345 = vmatprep.subr.mxu0 0.0
    %346 = vmatpush1.msra.mxu0 0.0
    %347 = vmatprep.subr.mxu0 0.0
    %348 = vmatpush1.msra.mxu0 0.0
    %349 = vmatprep.subr.mxu0 0.0
    %350 = vmatpush1.msra.mxu0 0.0
    %351 = vmatprep.subr.mxu0 0.0
    %352 = vmatpush1.msra.mxu0 0.0
    %353 = vmatprep.subr.mxu0 0.0
    %354 = vmatpush1.msra.mxu0 0.0
    %355 = vmatprep.subr.mxu0 0.0
    %356 = vmatpush1.msra.mxu0 0.0
    %357 = vmatprep.subr.mxu0 0.0
    %358 = vmatpush1.msra.mxu0 0.0
    %359 = vmatprep.subr.mxu0 0.0
    %360 = vmatpush1.msra.mxu0 0.0
    %361 = vmatprep.subr.mxu0 0.0
    %362 = vmatpush1.msra.mxu0 0.0
    %363 = vmatprep.subr.mxu0 0.0
    %364 = vmatpush1.msra.mxu0 0.0
    %365 = vmatprep.subr.mxu0 0.0
    %366 = vmatpush1.msra.mxu0 0.0
    %367 = vmatprep.subr.mxu0 0.0
    %368 = vmatpush1.msra.mxu0 0.0
    %369 = vmatprep.subr.mxu0 0.0
    %370 = vmatpush1.msra.mxu0 0.0
    %371 = vmatprep.subr.mxu0 0.0
    %372 = vmatpush1.msra.mxu0 0.0
    %373 = vmatprep.subr.mxu0 0.0
    %374 = vmatpush1.msra.mxu0 0.0
    %375 = vmatprep.subr.mxu0 0.0
    %376 = vmatpush1.msra.mxu0 0.0
    %377 = vmatprep.subr.mxu0 0.0
    %378 = vmatpush1.msra.mxu0 0.0
    %379 = vmatprep.mubr.f32.mxu0 0.0
    %380 = vmatmul.mubr.f32.gmra.mrb[0].mxu0 %v313
    %v381 = vpop.f32.mrb[0].mxu0
    %v382 = vadd.f32 %v308, %v381
    %v383 = vpop.f32.mrb[0].mxu0
    %384 = vdwg.mxu0
    %v385 = vld [vmem:[%s3 + $0x2] sm:$0x1]
    %v386 = vlaneseq
    %v387 = vshrl.u32 %v386, 7
    %v388 = vsub.s32 0, %v387
    %v389 = vrot.slane %v385, %v388
    %v390 = vadd.f32 %v382, %v389
    %v391 = vmax.f32 %v390, 0.0
    %s392 = scalar_lea.vmem %s4, 64
    %v393 = vld [vmem:[%s392] sm:$0xff]
    %v394 = vld [vmem:[%s392 + $0x8] sm:$0xff]
    %v395 = vld [vmem:[%s392 + $0x10] sm:$0xff]
    %v396 = vld [vmem:[%s392 + $0x18] sm:$0xff]
    %v397 = vld [vmem:[%s392 + $0x20] sm:$0xff]
    %v398 = vld [vmem:[%s392 + $0x28] sm:$0xff]
    %v399 = vld [vmem:[%s392 + $0x30] sm:$0xff]
    %v400 = vld [vmem:[%s392 + $0x38] sm:$0xff]
    %v401 = vld [vmem:[%s5 + $0x1] sm:$0x1]
    %v402 = vlaneseq
    %v403 = vshrl.u32 %v402, 7
    %v404 = vsub.s32 0, %v403
    %v405 = vrot.slane %v401, %v404
    %v407 = vsel %vm147, %v391, 0
    %409 = vmatprep.subr.mxu0 0.0
    %410 = vmatpush1.msra.mxu0 %v393
    %411 = vmatprep.subr.mxu0 0.0
    %412 = vmatpush1.msra.mxu0 %v394
    %413 = vmatprep.subr.mxu0 0.0
    %414 = vmatpush1.msra.mxu0 %v395
    %415 = vmatprep.subr.mxu0 0.0
    %416 = vmatpush1.msra.mxu0 %v396
    %417 = vmatprep.subr.mxu0 0.0
    %418 = vmatpush1.msra.mxu0 %v397
    %419 = vmatprep.subr.mxu0 0.0
    %420 = vmatpush1.msra.mxu0 %v398
    %421 = vmatprep.subr.mxu0 0.0
    %422 = vmatpush1.msra.mxu0 %v399
    %423 = vmatprep.subr.mxu0 0.0
    %424 = vmatpush1.msra.mxu0 %v400
    %425 = vmatprep.subr.mxu0 0.0
    %426 = vmatpush1.msra.mxu0 0.0
    %427 = vmatprep.subr.mxu0 0.0
    %428 = vmatpush1.msra.mxu0 0.0
    %429 = vmatprep.subr.mxu0 0.0
    %430 = vmatpush1.msra.mxu0 0.0
    %431 = vmatprep.subr.mxu0 0.0
    %432 = vmatpush1.msra.mxu0 0.0
    %433 = vmatprep.subr.mxu0 0.0
    %434 = vmatpush1.msra.mxu0 0.0
    %435 = vmatprep.subr.mxu0 0.0
    %436 = vmatpush1.msra.mxu0 0.0
    %437 = vmatprep.subr.mxu0 0.0
    %438 = vmatpush1.msra.mxu0 0.0
    %439 = vmatprep.subr.mxu0 0.0
    %440 = vmatpush1.msra.mxu0 0.0
    %441 = vmatprep.subr.mxu0 0.0
    %442 = vmatpush1.msra.mxu0 0.0
    %443 = vmatprep.subr.mxu0 0.0
    %444 = vmatpush1.msra.mxu0 0.0
    %445 = vmatprep.subr.mxu0 0.0
    %446 = vmatpush1.msra.mxu0 0.0
    %447 = vmatprep.subr.mxu0 0.0
    %448 = vmatpush1.msra.mxu0 0.0
    %449 = vmatprep.subr.mxu0 0.0
    %450 = vmatpush1.msra.mxu0 0.0
    %451 = vmatprep.subr.mxu0 0.0
    %452 = vmatpush1.msra.mxu0 0.0
    %453 = vmatprep.subr.mxu0 0.0
    %454 = vmatpush1.msra.mxu0 0.0
    %455 = vmatprep.subr.mxu0 0.0
    %456 = vmatpush1.msra.mxu0 0.0
    %457 = vmatprep.subr.mxu0 0.0
    %458 = vmatpush1.msra.mxu0 0.0
    %459 = vmatprep.subr.mxu0 0.0
    %460 = vmatpush1.msra.mxu0 0.0
    %461 = vmatprep.subr.mxu0 0.0
    %462 = vmatpush1.msra.mxu0 0.0
    %463 = vmatprep.subr.mxu0 0.0
    %464 = vmatpush1.msra.mxu0 0.0
    %465 = vmatprep.subr.mxu0 0.0
    %466 = vmatpush1.msra.mxu0 0.0
    %467 = vmatprep.subr.mxu0 0.0
    %468 = vmatpush1.msra.mxu0 0.0
    %469 = vmatprep.subr.mxu0 0.0
    %470 = vmatpush1.msra.mxu0 0.0
    %471 = vmatprep.subr.mxu0 0.0
    %472 = vmatpush1.msra.mxu0 0.0
    %473 = vmatprep.mubr.f32.mxu0 0.0
    %474 = vmatmul.mubr.f32.gmra.mrb[0].mxu0 %v407
    %v475 = vpop.f32.mrb[0].mxu0
    %v476 = vadd.f32 %v405, %v475
    %v477 = vpop.f32.mrb[0].mxu0
    %478 = vdwg.mxu0
    %s479 = scalar_lea.vmem [#allocation2], 256
    %v480 = vld [vmem:[%s479] sm:$0xff]
    %s481 = scalar_lea.vmem [#allocation2], 320
    %v482 = vld [vmem:[%s481] sm:$0xff]
    %v484 = vsel %vm311, %v226, 0
    %486 = vmatprep.subr.mxu0 0.0
    %487 = vmatpush1.msra.mxu0 %v482
    %488 = vmatprep.subr.mxu0 0.0
    %489 = vmatpush1.msra.mxu0 0.0
    %490 = vmatprep.subr.mxu0 0.0
    %491 = vmatpush1.msra.mxu0 0.0
    %492 = vmatprep.subr.mxu0 0.0
    %493 = vmatpush1.msra.mxu0 0.0
    %494 = vmatprep.subr.mxu0 0.0
    %495 = vmatpush1.msra.mxu0 0.0
    %496 = vmatprep.subr.mxu0 0.0
    %497 = vmatpush1.msra.mxu0 0.0
    %498 = vmatprep.subr.mxu0 0.0
    %499 = vmatpush1.msra.mxu0 0.0
    %500 = vmatprep.subr.mxu0 0.0
    %501 = vmatpush1.msra.mxu0 0.0
    %502 = vmatprep.subr.mxu0 0.0
    %503 = vmatpush1.msra.mxu0 0.0
    %504 = vmatprep.subr.mxu0 0.0
    %505 = vmatpush1.msra.mxu0 0.0
    %506 = vmatprep.subr.mxu0 0.0
    %507 = vmatpush1.msra.mxu0 0.0
    %508 = vmatprep.subr.mxu0 0.0
    %509 = vmatpush1.msra.mxu0 0.0
    %510 = vmatprep.subr.mxu0 0.0
    %511 = vmatpush1.msra.mxu0 0.0
    %512 = vmatprep.subr.mxu0 0.0
    %513 = vmatpush1.msra.mxu0 0.0
    %514 = vmatprep.subr.mxu0 0.0
    %515 = vmatpush1.msra.mxu0 0.0
    %516 = vmatprep.subr.mxu0 0.0
    %517 = vmatpush1.msra.mxu0 0.0
    %518 = vmatprep.subr.mxu0 0.0
    %519 = vmatpush1.msra.mxu0 0.0
    %520 = vmatprep.subr.mxu0 0.0
    %521 = vmatpush1.msra.mxu0 0.0
    %522 = vmatprep.subr.mxu0 0.0
    %523 = vmatpush1.msra.mxu0 0.0
    %524 = vmatprep.subr.mxu0 0.0
    %525 = vmatpush1.msra.mxu0 0.0
    %526 = vmatprep.subr.mxu0 0.0
    %527 = vmatpush1.msra.mxu0 0.0
    %528 = vmatprep.subr.mxu0 0.0
    %529 = vmatpush1.msra.mxu0 0.0
    %530 = vmatprep.subr.mxu0 0.0
    %531 = vmatpush1.msra.mxu0 0.0
    %532 = vmatprep.subr.mxu0 0.0
    %533 = vmatpush1.msra.mxu0 0.0
    %534 = vmatprep.subr.mxu0 0.0
    %535 = vmatpush1.msra.mxu0 0.0
    %536 = vmatprep.subr.mxu0 0.0
    %537 = vmatpush1.msra.mxu0 0.0
    %538 = vmatprep.subr.mxu0 0.0
    %539 = vmatpush1.msra.mxu0 0.0
    %540 = vmatprep.subr.mxu0 0.0
    %541 = vmatpush1.msra.mxu0 0.0
    %542 = vmatprep.subr.mxu0 0.0
    %543 = vmatpush1.msra.mxu0 0.0
    %544 = vmatprep.subr.mxu0 0.0
    %545 = vmatpush1.msra.mxu0 0.0
    %546 = vmatprep.subr.mxu0 0.0
    %547 = vmatpush1.msra.mxu0 0.0
    %548 = vmatprep.subr.mxu0 0.0
    %549 = vmatpush1.msra.mxu0 0.0
    %550 = vmatprep.mubr.f32.mxu0 0.0
    %551 = vmatmul.mubr.f32.gmra.mrb[0].mxu0 %v484
    %v552 = vpop.f32.mrb[0].mxu0
    %v553 = vadd.f32 0.0, %v552
    %v554 = vpop.f32.mrb[0].mxu0
    %555 = vdwg.mxu0
    %556 = vmatprep.subr.mxu0 0.0
    %557 = vmatpush1.msra.mxu0 %v480
    %558 = vmatprep.subr.mxu0 0.0
    %559 = vmatpush1.msra.mxu0 0.0
    %560 = vmatprep.subr.mxu0 0.0
    %561 = vmatpush1.msra.mxu0 0.0
    %562 = vmatprep.subr.mxu0 0.0
    %563 = vmatpush1.msra.mxu0 0.0
    %564 = vmatprep.subr.mxu0 0.0
    %565 = vmatpush1.msra.mxu0 0.0
    %566 = vmatprep.subr.mxu0 0.0
    %567 = vmatpush1.msra.mxu0 0.0
    %568 = vmatprep.subr.mxu0 0.0
    %569 = vmatpush1.msra.mxu0 0.0
    %570 = vmatprep.subr.mxu0 0.0
    %571 = vmatpush1.msra.mxu0 0.0
    %572 = vmatprep.subr.mxu0 0.0
    %573 = vmatpush1.msra.mxu0 0.0
    %574 = vmatprep.subr.mxu0 0.0
    %575 = vmatpush1.msra.mxu0 0.0
    %576 = vmatprep.subr.mxu0 0.0
    %577 = vmatpush1.msra.mxu0 0.0
    %578 = vmatprep.subr.mxu0 0.0
    %579 = vmatpush1.msra.mxu0 0.0
    %580 = vmatprep.subr.mxu0 0.0
    %581 = vmatpush1.msra.mxu0 0.0
    %582 = vmatprep.subr.mxu0 0.0
    %583 = vmatpush1.msra.mxu0 0.0
    %584 = vmatprep.subr.mxu0 0.0
    %585 = vmatpush1.msra.mxu0 0.0
    %586 = vmatprep.subr.mxu0 0.0
    %587 = vmatpush1.msra.mxu0 0.0
    %588 = vmatprep.subr.mxu0 0.0
    %589 = vmatpush1.msra.mxu0 0.0
    %590 = vmatprep.subr.mxu0 0.0
    %591 = vmatpush1.msra.mxu0 0.0
    %592 = vmatprep.subr.mxu0 0.0
    %593 = vmatpush1.msra.mxu0 0.0
    %594 = vmatprep.subr.mxu0 0.0
    %595 = vmatpush1.msra.mxu0 0.0
    %596 = vmatprep.subr.mxu0 0.0
    %597 = vmatpush1.msra.mxu0 0.0
    %598 = vmatprep.subr.mxu0 0.0
    %599 = vmatpush1.msra.mxu0 0.0
    %600 = vmatprep.subr.mxu0 0.0
    %601 = vmatpush1.msra.mxu0 0.0
    %602 = vmatprep.subr.mxu0 0.0
    %603 = vmatpush1.msra.mxu0 0.0
    %604 = vmatprep.subr.mxu0 0.0
    %605 = vmatpush1.msra.mxu0 0.0
    %606 = vmatprep.subr.mxu0 0.0
    %607 = vmatpush1.msra.mxu0 0.0
    %608 = vmatprep.subr.mxu0 0.0
    %609 = vmatpush1.msra.mxu0 0.0
    %610 = vmatprep.subr.mxu0 0.0
    %611 = vmatpush1.msra.mxu0 0.0
    %612 = vmatprep.subr.mxu0 0.0
    %613 = vmatpush1.msra.mxu0 0.0
    %614 = vmatprep.subr.mxu0 0.0
    %615 = vmatpush1.msra.mxu0 0.0
    %616 = vmatprep.subr.mxu0 0.0
    %617 = vmatpush1.msra.mxu0 0.0
    %618 = vmatprep.subr.mxu0 0.0
    %619 = vmatpush1.msra.mxu0 0.0
    %620 = vmatprep.mubr.f32.mxu0 0.0
    %621 = vmatmul.mubr.f32.gmra.mrb[0].mxu0 %v313
    %v622 = vpop.f32.mrb[0].mxu0
    %v623 = vadd.f32 %v553, %v622
    %v624 = vpop.f32.mrb[0].mxu0
    %625 = vdwg.mxu0
    %v626 = vld [vmem:[%s3 + $0x3] sm:$0x1]
    %v627 = vlaneseq
    %v628 = vshrl.u32 %v627, 7
    %v629 = vsub.s32 0, %v628
    %v630 = vrot.slane %v626, %v629
    %v631 = vadd.f32 %v623, %v630
    %v632 = vmax.f32 %v631, 0.0
    %s633 = scalar_lea.vmem [#allocation2], 384
    %v634 = vld [vmem:[%s633] sm:$0xff]
    %v635 = vld [vmem:[%s633 + $0x8] sm:$0xff]
    %v636 = vld [vmem:[%s633 + $0x10] sm:$0xff]
    %v637 = vld [vmem:[%s633 + $0x18] sm:$0xff]
    %v638 = vld [vmem:[%s633 + $0x20] sm:$0xff]
    %v639 = vld [vmem:[%s633 + $0x28] sm:$0xff]
    %v640 = vld [vmem:[%s633 + $0x30] sm:$0xff]
    %v641 = vld [vmem:[%s633 + $0x38] sm:$0xff]
    %v642 = vld [vmem:[%s3 + $0x4] sm:$0x1]
    %v643 = vlaneseq
    %v644 = vshrl.u32 %v643, 7
    %v645 = vsub.s32 0, %v644
    %v646 = vrot.slane %v642, %v645
    %v648 = vsel %vm147, %v632, 0
    %650 = vmatprep.subr.mxu0 0.0
    %651 = vmatpush1.msra.mxu0 %v634
    %652 = vmatprep.subr.mxu0 0.0
    %653 = vmatpush1.msra.mxu0 %v635
    %654 = vmatprep.subr.mxu0 0.0
    %655 = vmatpush1.msra.mxu0 %v636
    %656 = vmatprep.subr.mxu0 0.0
    %657 = vmatpush1.msra.mxu0 %v637
    %658 = vmatprep.subr.mxu0 0.0
    %659 = vmatpush1.msra.mxu0 %v638
    %660 = vmatprep.subr.mxu0 0.0
    %661 = vmatpush1.msra.mxu0 %v639
    %662 = vmatprep.subr.mxu0 0.0
    %663 = vmatpush1.msra.mxu0 %v640
    %664 = vmatprep.subr.mxu0 0.0
    %665 = vmatpush1.msra.mxu0 %v641
    %666 = vmatprep.subr.mxu0 0.0
    %667 = vmatpush1.msra.mxu0 0.0
    %668 = vmatprep.subr.mxu0 0.0
    %669 = vmatpush1.msra.mxu0 0.0
    %670 = vmatprep.subr.mxu0 0.0
    %671 = vmatpush1.msra.mxu0 0.0
    %672 = vmatprep.subr.mxu0 0.0
    %673 = vmatpush1.msra.mxu0 0.0
    %674 = vmatprep.subr.mxu0 0.0
    %675 = vmatpush1.msra.mxu0 0.0
    %676 = vmatprep.subr.mxu0 0.0
    %677 = vmatpush1.msra.mxu0 0.0
    %678 = vmatprep.subr.mxu0 0.0
    %679 = vmatpush1.msra.mxu0 0.0
    %680 = vmatprep.subr.mxu0 0.0
    %681 = vmatpush1.msra.mxu0 0.0
    %682 = vmatprep.subr.mxu0 0.0
    %683 = vmatpush1.msra.mxu0 0.0
    %684 = vmatprep.subr.mxu0 0.0
    %685 = vmatpush1.msra.mxu0 0.0
    %686 = vmatprep.subr.mxu0 0.0
    %687 = vmatpush1.msra.mxu0 0.0
    %688 = vmatprep.subr.mxu0 0.0
    %689 = vmatpush1.msra.mxu0 0.0
    %690 = vmatprep.subr.mxu0 0.0
    %691 = vmatpush1.msra.mxu0 0.0
    %692 = vmatprep.subr.mxu0 0.0
    %693 = vmatpush1.msra.mxu0 0.0
    %694 = vmatprep.subr.mxu0 0.0
    %695 = vmatpush1.msra.mxu0 0.0
    %696 = vmatprep.subr.mxu0 0.0
    %697 = vmatpush1.msra.mxu0 0.0
    %698 = vmatprep.subr.mxu0 0.0
    %699 = vmatpush1.msra.mxu0 0.0
    %700 = vmatprep.subr.mxu0 0.0
    %701 = vmatpush1.msra.mxu0 0.0
    %702 = vmatprep.subr.mxu0 0.0
    %703 = vmatpush1.msra.mxu0 0.0
    %704 = vmatprep.subr.mxu0 0.0
    %705 = vmatpush1.msra.mxu0 0.0
    %706 = vmatprep.subr.mxu0 0.0
    %707 = vmatpush1.msra.mxu0 0.0
    %708 = vmatprep.subr.mxu0 0.0
    %709 = vmatpush1.msra.mxu0 0.0
    %710 = vmatprep.subr.mxu0 0.0
    %711 = vmatpush1.msra.mxu0 0.0
    %712 = vmatprep.subr.mxu0 0.0
    %713 = vmatpush1.msra.mxu0 0.0
    %714 = vmatprep.mubr.f32.mxu0 0.0
    %715 = vmatmul.mubr.f32.gmra.mrb[0].mxu0 %v648
    %v716 = vpop.f32.mrb[0].mxu0
    %v717 = vadd.f32 %v646, %v716
    %v718 = vpop.f32.mrb[0].mxu0
    %719 = vdwg.mxu0
    %v720 = vmax.f32 %v717, 0.0
    %s721 = scalar_lea.vmem %s4, 192
    %v722 = vld [vmem:[%s721] sm:$0xff]
    %v723 = vld [vmem:[%s721 + $0x8] sm:$0xff]
    %v724 = vld [vmem:[%s721 + $0x10] sm:$0xff]
    %v725 = vld [vmem:[%s721 + $0x18] sm:$0xff]
    %v726 = vld [vmem:[%s721 + $0x20] sm:$0xff]
    %v727 = vld [vmem:[%s721 + $0x28] sm:$0xff]
    %v728 = vld [vmem:[%s721 + $0x30] sm:$0xff]
    %v729 = vld [vmem:[%s721 + $0x38] sm:$0xff]
    %v730 = vld [vmem:[%s5 + $0x3] sm:$0x1]
    %v731 = vlaneseq
    %v732 = vshrl.u32 %v731, 7
    %v733 = vsub.s32 0, %v732
    %v734 = vrot.slane %v730, %v733
    %v736 = vsel %vm147, %v720, 0
    %738 = vmatprep.subr.mxu0 0.0
    %739 = vmatpush1.msra.mxu0 %v722
    %740 = vmatprep.subr.mxu0 0.0
    %741 = vmatpush1.msra.mxu0 %v723
    %742 = vmatprep.subr.mxu0 0.0
    %743 = vmatpush1.msra.mxu0 %v724
    %744 = vmatprep.subr.mxu0 0.0
    %745 = vmatpush1.msra.mxu0 %v725
    %746 = vmatprep.subr.mxu0 0.0
    %747 = vmatpush1.msra.mxu0 %v726
    %748 = vmatprep.subr.mxu0 0.0
    %749 = vmatpush1.msra.mxu0 %v727
    %750 = vmatprep.subr.mxu0 0.0
    %751 = vmatpush1.msra.mxu0 %v728
    %752 = vmatprep.subr.mxu0 0.0
    %753 = vmatpush1.msra.mxu0 %v729
    %754 = vmatprep.subr.mxu0 0.0
    %755 = vmatpush1.msra.mxu0 0.0
    %756 = vmatprep.subr.mxu0 0.0
    %757 = vmatpush1.msra.mxu0 0.0
    %758 = vmatprep.subr.mxu0 0.0
    %759 = vmatpush1.msra.mxu0 0.0
    %760 = vmatprep.subr.mxu0 0.0
    %761 = vmatpush1.msra.mxu0 0.0
    %762 = vmatprep.subr.mxu0 0.0
    %763 = vmatpush1.msra.mxu0 0.0
    %764 = vmatprep.subr.mxu0 0.0
    %765 = vmatpush1.msra.mxu0 0.0
    %766 = vmatprep.subr.mxu0 0.0
    %767 = vmatpush1.msra.mxu0 0.0
    %768 = vmatprep.subr.mxu0 0.0
    %769 = vmatpush1.msra.mxu0 0.0
    %770 = vmatprep.subr.mxu0 0.0
    %771 = vmatpush1.msra.mxu0 0.0
    %772 = vmatprep.subr.mxu0 0.0
    %773 = vmatpush1.msra.mxu0 0.0
    %774 = vmatprep.subr.mxu0 0.0
    %775 = vmatpush1.msra.mxu0 0.0
    %776 = vmatprep.subr.mxu0 0.0
    %777 = vmatpush1.msra.mxu0 0.0
    %778 = vmatprep.subr.mxu0 0.0
    %779 = vmatpush1.msra.mxu0 0.0
    %780 = vmatprep.subr.mxu0 0.0
    %781 = vmatpush1.msra.mxu0 0.0
    %782 = vmatprep.subr.mxu0 0.0
    %783 = vmatpush1.msra.mxu0 0.0
    %784 = vmatprep.subr.mxu0 0.0
    %785 = vmatpush1.msra.mxu0 0.0
    %786 = vmatprep.subr.mxu0 0.0
    %787 = vmatpush1.msra.mxu0 0.0
    %788 = vmatprep.subr.mxu0 0.0
    %789 = vmatpush1.msra.mxu0 0.0
    %790 = vmatprep.subr.mxu0 0.0
    %791 = vmatpush1.msra.mxu0 0.0
    %792 = vmatprep.subr.mxu0 0.0
    %793 = vmatpush1.msra.mxu0 0.0
    %794 = vmatprep.subr.mxu0 0.0
    %795 = vmatpush1.msra.mxu0 0.0
    %796 = vmatprep.subr.mxu0 0.0
    %797 = vmatpush1.msra.mxu0 0.0
    %798 = vmatprep.subr.mxu0 0.0
    %799 = vmatpush1.msra.mxu0 0.0
    %800 = vmatprep.subr.mxu0 0.0
    %801 = vmatpush1.msra.mxu0 0.0
    %802 = vmatprep.mubr.f32.mxu0 0.0
    %803 = vmatmul.mubr.f32.gmra.mrb[0].mxu0 %v736
    %v804 = vpop.f32.mrb[0].mxu0
    %v805 = vadd.f32 %v734, %v804
    %v806 = vpop.f32.mrb[0].mxu0
    %807 = vdwg.mxu0
    %808 = vst.msk [vmem:[%s7] sm:$0xff] %vm233, %v805
    %809 = vst.msk [vmem:[%s6] sm:$0xff] %vm311, %v221
    %810 = vst.msk [vmem:[%s6 + $0x8] sm:$0xff] %vm311, %v226
    %811 = vst.msk [vmem:[%s6 + $0x10] sm:$0xff] %vm311, %v476
    %s812 = scalar_lea.vmem [#allocation2], 64
    %v813 = vld [vmem:[%s812] sm:$0xff]
    %v814 = vld [vmem:[%s3 + $0x1] sm:$0x1]
    %v815 = vlaneseq
    %v816 = vshrl.u32 %v815, 7
    %v817 = vsub.s32 0, %v816
    %v818 = vrot.slane %v814, %v817
    %v820 = vsel %vm311, %v476, 0
    %822 = vmatprep.subr.mxu0 0.0
    %823 = vmatpush1.msra.mxu0 %v813
    %824 = vmatprep.subr.mxu0 0.0
    %825 = vmatpush1.msra.mxu0 0.0
    %826 = vmatprep.subr.mxu0 0.0
    %827 = vmatpush1.msra.mxu0 0.0
    %828 = vmatprep.subr.mxu0 0.0
    %829 = vmatpush1.msra.mxu0 0.0
    %830 = vmatprep.subr.mxu0 0.0
    %831 = vmatpush1.msra.mxu0 0.0
    %832 = vmatprep.subr.mxu0 0.0
    %833 = vmatpush1.msra.mxu0 0.0
    %834 = vmatprep.subr.mxu0 0.0
    %835 = vmatpush1.msra.mxu0 0.0
    %836 = vmatprep.subr.mxu0 0.0
    %837 = vmatpush1.msra.mxu0 0.0
    %838 = vmatprep.subr.mxu0 0.0
    %839 = vmatpush1.msra.mxu0 0.0
    %840 = vmatprep.subr.mxu0 0.0
    %841 = vmatpush1.msra.mxu0 0.0
    %842 = vmatprep.subr.mxu0 0.0
    %843 = vmatpush1.msra.mxu0 0.0
    %844 = vmatprep.subr.mxu0 0.0
    %845 = vmatpush1.msra.mxu0 0.0
    %846 = vmatprep.subr.mxu0 0.0
    %847 = vmatpush1.msra.mxu0 0.0
    %848 = vmatprep.subr.mxu0 0.0
    %849 = vmatpush1.msra.mxu0 0.0
    %850 = vmatprep.subr.mxu0 0.0
    %851 = vmatpush1.msra.mxu0 0.0
    %852 = vmatprep.subr.mxu0 0.0
    %853 = vmatpush1.msra.mxu0 0.0
    %854 = vmatprep.subr.mxu0 0.0
    %855 = vmatpush1.msra.mxu0 0.0
    %856 = vmatprep.subr.mxu0 0.0
    %857 = vmatpush1.msra.mxu0 0.0
    %858 = vmatprep.subr.mxu0 0.0
    %859 = vmatpush1.msra.mxu0 0.0
    %860 = vmatprep.subr.mxu0 0.0
    %861 = vmatpush1.msra.mxu0 0.0
    %862 = vmatprep.subr.mxu0 0.0
    %863 = vmatpush1.msra.mxu0 0.0
    %864 = vmatprep.subr.mxu0 0.0
    %865 = vmatpush1.msra.mxu0 0.0
    %866 = vmatprep.subr.mxu0 0.0
    %867 = vmatpush1.msra.mxu0 0.0
    %868 = vmatprep.subr.mxu0 0.0
    %869 = vmatpush1.msra.mxu0 0.0
    %870 = vmatprep.subr.mxu0 0.0
    %871 = vmatpush1.msra.mxu0 0.0
    %872 = vmatprep.subr.mxu0 0.0
    %873 = vmatpush1.msra.mxu0 0.0
    %874 = vmatprep.subr.mxu0 0.0
    %875 = vmatpush1.msra.mxu0 0.0
    %876 = vmatprep.subr.mxu0 0.0
    %877 = vmatpush1.msra.mxu0 0.0
    %878 = vmatprep.subr.mxu0 0.0
    %879 = vmatpush1.msra.mxu0 0.0
    %880 = vmatprep.subr.mxu0 0.0
    %881 = vmatpush1.msra.mxu0 0.0
    %882 = vmatprep.subr.mxu0 0.0
    %883 = vmatpush1.msra.mxu0 0.0
    %884 = vmatprep.subr.mxu0 0.0
    %885 = vmatpush1.msra.mxu0 0.0
    %886 = vmatprep.mubr.f32.mxu0 0.0
    %887 = vmatmul.mubr.f32.gmra.mrb[0].mxu0 %v313
    %v888 = vpop.f32.mrb[0].mxu0
    %v889 = vadd.f32 %v818, %v888
    %v890 = vpop.f32.mrb[0].mxu0
    %891 = vmatprep.mubr.f32.mxu0 0.0
    %892 = vmatmul.mubr.f32.gmra.mrb[0].mxu0 %v484
    %v893 = vpop.f32.mrb[0].mxu0
    %v894 = vadd.f32 %v818, %v893
    %v895 = vpop.f32.mrb[0].mxu0
    %896 = vmatprep.mubr.f32.mxu0 0.0
    %897 = vmatmul.mubr.f32.gmra.mrb[0].mxu0 %v820
    %v898 = vpop.f32.mrb[0].mxu0
    %v899 = vadd.f32 %v818, %v898
    %v900 = vpop.f32.mrb[0].mxu0
    %901 = vdwg.mxu0
    %v902 = vmax.f32 %v889, 0.0
    %v903 = vmax.f32 %v894, 0.0
    %v904 = vmax.f32 %v899, 0.0
    %s905 = scalar_lea.vmem %s4, 128
    %v906 = vld [vmem:[%s905] sm:$0xff]
    %v907 = vld [vmem:[%s905 + $0x8] sm:$0xff]
    %v908 = vld [vmem:[%s905 + $0x10] sm:$0xff]
    %v909 = vld [vmem:[%s905 + $0x18] sm:$0xff]
    %v910 = vld [vmem:[%s905 + $0x20] sm:$0xff]
    %v911 = vld [vmem:[%s905 + $0x28] sm:$0xff]
    %v912 = vld [vmem:[%s905 + $0x30] sm:$0xff]
    %v913 = vld [vmem:[%s905 + $0x38] sm:$0xff]
    %v914 = vld [vmem:[%s5 + $0x2] sm:$0x1]
    %v915 = vlaneseq
    %v916 = vshrl.u32 %v915, 7
    %v917 = vsub.s32 0, %v916
    %v918 = vrot.slane %v914, %v917
    %v920 = vsel %vm147, %v902, 0
    %v923 = vsel %vm147, %v903, 0
    %v926 = vsel %vm147, %v904, 0
    %928 = vmatprep.subr.mxu0 0.0
    %929 = vmatpush1.msra.mxu0 %v906
    %930 = vmatprep.subr.mxu0 0.0
    %931 = vmatpush1.msra.mxu0 %v907
    %932 = vmatprep.subr.mxu0 0.0
    %933 = vmatpush1.msra.mxu0 %v908
    %934 = vmatprep.subr.mxu0 0.0
    %935 = vmatpush1.msra.mxu0 %v909
    %936 = vmatprep.subr.mxu0 0.0
    %937 = vmatpush1.msra.mxu0 %v910
    %938 = vmatprep.subr.mxu0 0.0
    %939 = vmatpush1.msra.mxu0 %v911
    %940 = vmatprep.subr.mxu0 0.0
    %941 = vmatpush1.msra.mxu0 %v912
    %942 = vmatprep.subr.mxu0 0.0
    %943 = vmatpush1.msra.mxu0 %v913
    %944 = vmatprep.subr.mxu0 0.0
    %945 = vmatpush1.msra.mxu0 0.0
    %946 = vmatprep.subr.mxu0 0.0
    %947 = vmatpush1.msra.mxu0 0.0
    %948 = vmatprep.subr.mxu0 0.0
    %949 = vmatpush1.msra.mxu0 0.0
    %950 = vmatprep.subr.mxu0 0.0
    %951 = vmatpush1.msra.mxu0 0.0
    %952 = vmatprep.subr.mxu0 0.0
    %953 = vmatpush1.msra.mxu0 0.0
    %954 = vmatprep.subr.mxu0 0.0
    %955 = vmatpush1.msra.mxu0 0.0
    %956 = vmatprep.subr.mxu0 0.0
    %957 = vmatpush1.msra.mxu0 0.0
    %958 = vmatprep.subr.mxu0 0.0
    %959 = vmatpush1.msra.mxu0 0.0
    %960 = vmatprep.subr.mxu0 0.0
    %961 = vmatpush1.msra.mxu0 0.0
    %962 = vmatprep.subr.mxu0 0.0
    %963 = vmatpush1.msra.mxu0 0.0
    %964 = vmatprep.subr.mxu0 0.0
    %965 = vmatpush1.msra.mxu0 0.0
    %966 = vmatprep.subr.mxu0 0.0
    %967 = vmatpush1.msra.mxu0 0.0
    %968 = vmatprep.subr.mxu0 0.0
    %969 = vmatpush1.msra.mxu0 0.0
    %970 = vmatprep.subr.mxu0 0.0
    %971 = vmatpush1.msra.mxu0 0.0
    %972 = vmatprep.subr.mxu0 0.0
    %973 = vmatpush1.msra.mxu0 0.0
    %974 = vmatprep.subr.mxu0 0.0
    %975 = vmatpush1.msra.mxu0 0.0
    %976 = vmatprep.subr.mxu0 0.0
    %977 = vmatpush1.msra.mxu0 0.0
    %978 = vmatprep.subr.mxu0 0.0
    %979 = vmatpush1.msra.mxu0 0.0
    %980 = vmatprep.subr.mxu0 0.0
    %981 = vmatpush1.msra.mxu0 0.0
    %982 = vmatprep.subr.mxu0 0.0
    %983 = vmatpush1.msra.mxu0 0.0
    %984 = vmatprep.subr.mxu0 0.0
    %985 = vmatpush1.msra.mxu0 0.0
    %986 = vmatprep.subr.mxu0 0.0
    %987 = vmatpush1.msra.mxu0 0.0
    %988 = vmatprep.subr.mxu0 0.0
    %989 = vmatpush1.msra.mxu0 0.0
    %990 = vmatprep.subr.mxu0 0.0
    %991 = vmatpush1.msra.mxu0 0.0
    %992 = vmatprep.mubr.f32.mxu0 0.0
    %993 = vmatmul.mubr.f32.gmra.mrb[0].mxu0 %v920
    %v994 = vpop.f32.mrb[0].mxu0
    %v995 = vadd.f32 %v918, %v994
    %v996 = vpop.f32.mrb[0].mxu0
    %997 = vmatprep.mubr.f32.mxu0 0.0
    %998 = vmatmul.mubr.f32.gmra.mrb[0].mxu0 %v923
    %v999 = vpop.f32.mrb[0].mxu0
    %v1000 = vadd.f32 %v918, %v999
    %v1001 = vpop.f32.mrb[0].mxu0
    %1002 = vmatprep.mubr.f32.mxu0 0.0
    %1003 = vmatmul.mubr.f32.gmra.mrb[0].mxu0 %v926
    %v1004 = vpop.f32.mrb[0].mxu0
    %v1005 = vadd.f32 %v918, %v1004
    %v1006 = vpop.f32.mrb[0].mxu0
    %1007 = vdwg.mxu0
    %1008 = vst.msk [vmem:[%s8] sm:$0xff] %vm50, %v995
    %1009 = vst.msk [vmem:[%s8 + $0x8] sm:$0xff] %vm50, %v1000
    %1010 = vst.msk [vmem:[%s8 + $0x10] sm:$0xff] %vm50, %v1005
    // Predicated region
    $region30: #{upn_forward.1} parent=1 // pred_check
      _
    $region31: #{upn_forward.1} parent=1 // pred_check_branch
      %1012 = sbr.rel (0) target = $region33
    $region32: #{upn_forward.1} parent=1 // pred_region
      _
    $region33: #{upn_forward.1} parent=1 // pred_fallthru
      _
    // Predicated region
    $region34: #{upn_forward.1} parent=1 // pred_check
      _
    $region35: #{upn_forward.1} parent=1 // pred_check_branch
      %1014 = sbr.rel (0) target = $region37
    $region36: #{upn_forward.1} parent=1 // pred_region
      _
    $region37: #{upn_forward.1} parent=1 // pred_fallthru
      _
    // Predicated region
    $region38: #{upn_forward.1} parent=1 // pred_check
      _
    $region39: #{upn_forward.1} parent=1 // pred_check_branch
      %1016 = sbr.rel (0) target = $region41
    $region40: #{upn_forward.1} parent=1 // pred_region
      _
    $region41: #{upn_forward.1} parent=1 // pred_fallthru
      _
    // Predicated region
    $region42: #{upn_forward.1} parent=1 // pred_check
      _
    $region43: #{upn_forward.1} parent=1 // pred_check_branch
      %1018 = sbr.rel (0) target = $region45
    $region44: #{upn_forward.1} parent=1 // pred_region
      _
    $region45: #{upn_forward.1} parent=1 // pred_fallthru
      _
    // Predicated region
    $region46: #{upn_forward.1} parent=1 // pred_check
      _
    $region47: #{upn_forward.1} parent=1 // pred_check_branch
      %1020 = sbr.rel (0) target = $region49
    $region48: #{upn_forward.1} parent=1 // pred_region
      _
    $region49: #{upn_forward.1} parent=1 // pred_fallthru
      _
    // Predicated region
    $region50: #{upn_forward.1} parent=1 // pred_check
      _
    $region51: #{upn_forward.1} parent=1 // pred_check_branch
      %1022 = sbr.rel (0) target = $region53
    $region52: #{upn_forward.1} parent=1 // pred_region
      _
    $region53: #{upn_forward.1} parent=1 // pred_fallthru
      _
    %1023 = vsyncpa [#allocation3], 1

</llo_original>
